<compile_context>
chip_gen: v5e
topology: v5e:2x2
jax: 0.10.0
libtpu: 0.0.40
codegen_flags: <defaults>
</compile_context>

<pallas_src>
import functools
import math

import jax
import jax.numpy as jnp
from jax import lax
from jax.experimental import pallas as pl
from jax.experimental.pallas import tpu as pltpu


_MAX_TILE_B = 256            # fills the 256-wide MXU M dimension on v6e/v7x
_SUBLANE = 16                # bf16 packs 16 rows / vreg (also a multiple of f32's 8)
_MXU_DTYPE = jnp.bfloat16    # native MXU input dtype on v5e/v6e/v7x


def _round_up(x, m):
    return ((x + m - 1) // m) * m


@functools.lru_cache(maxsize=None)
def _vmem_limit_bytes():
    """Generation-aware scoped-VMEM limit (~96 MiB on v5e/v6e, ~48 MiB on v7x)."""
    cap = 64 * 1024 * 1024
    try:
        cap = int(pltpu.get_tpu_info().vmem_capacity_bytes)
    except Exception:
        pass
    return min((cap * 3) // 4, 100 * 1024 * 1024)


def _compiler_params():
    return pltpu.CompilerParams(
        dimension_semantics=("parallel",),        # batch tiles are independent
        vmem_limit_bytes=_vmem_limit_bytes())


def _pick_tile_b(batch, per_row_bytes, weight_bytes):
    """Batch tile: as large as possible (<= 256 rows) while
       * keeping >= 2 grid steps when the batch allows (both v7x TCs busy), and
       * fitting the double-buffered per-row tiles + resident weights in VMEM."""
    limit = _vmem_limit_bytes()
    # TODO(synk): add a feature-dim ('arbitrary') grid axis for layers whose
    #             weight does not fit resident in VMEM (very large models on v7x).
    assert weight_bytes <= limit // 2, (
        "weight too large for the resident-VMEM path; needs feature-dim tiling")
    budget = max(limit - weight_bytes - (4 << 20), 1 << 20)
    if batch > _MAX_TILE_B:
        tile = _MAX_TILE_B
    elif batch > 2 * _SUBLANE:
        tile = _round_up((batch + 1) // 2, _SUBLANE)   # keep nb >= 2
    else:
        tile = _round_up(max(batch, 1), _SUBLANE)
    while tile > _SUBLANE and tile * per_row_bytes > budget:
        tile = _round_up(tile // 2, _SUBLANE)
    return tile


def _pad_batch(x, tile_b):
    b = x.shape[0]
    bp = _round_up(b, tile_b)
    if bp == b:
        return x
    return jnp.pad(x, ((0, bp - b),) + ((0, 0),) * (x.ndim - 1))


# ---------------------------------------------------------------------------
# Kernel 1: plain forward pass (unroll_step == 0)
# ---------------------------------------------------------------------------
def _linear_fwd_kernel(*refs, bias_sign, has_bias):
    if has_bias:
        x_ref, wt_ref, b_ref, act_ref, pre_ref = refs
    else:
        x_ref, wt_ref, pre_ref = refs

    # _operator: x @ W^T.  wT is pre-transposed [in_f, out_f] so this is a plain
    # k-major contraction (no in-kernel transpose); operands in bf16, f32 accumulate.
    pre = jnp.dot(x_ref[...].astype(wt_ref.dtype), wt_ref[...],
                  preferred_element_type=jnp.float32)
    pre_ref[...] = pre.astype(pre_ref.dtype)

    if has_bias:
        # act_fn default is identity (linear activation)
        # TODO(synk): arbitrary torch.nn.Module act_fn instances are not translated;
        #             only the default identity activation is implemented here.
        act = pre + bias_sign * b_ref[...].astype(jnp.float32)
        act_ref[...] = act.astype(act_ref.dtype)


def linear_forward(x, wT, b, bias_sign):
    """wT is the pre-transposed weight [in_features, out_features] (bf16)."""
    batch, in_f = x.shape
    out_f = wT.shape[1]
    has_bias = b is not None

    n_outputs = 2 if has_bias else 1
    per_row = 2 * (x.dtype.itemsize * in_f + 4 * n_outputs * out_f)   # double-buffered
    weight_bytes = 2 * wT.size * wT.dtype.itemsize
    tile_b = _pick_tile_b(batch, per_row, weight_bytes)

    xp = _pad_batch(x, tile_b)
    bp = xp.shape[0]
    nb = bp // tile_b

    kernel = functools.partial(_linear_fwd_kernel,
                               bias_sign=float(bias_sign), has_bias=has_bias)

    inputs = [xp, wT]
    in_specs = [pl.BlockSpec((tile_b, in_f), lambda i: (i, 0)),
                pl.BlockSpec((in_f, out_f), lambda i: (0, 0))]   # weight resident
    blk_out = pl.BlockSpec((tile_b, out_f), lambda i: (i, 0))
    if has_bias:
        inputs.append(b.reshape(1, out_f).astype(jnp.float32))
        in_specs.append(pl.BlockSpec((1, out_f), lambda i: (0, 0)))
        out_specs = [blk_out, blk_out]
        out_shape = [jax.ShapeDtypeStruct((bp, out_f), jnp.float32),
                     jax.ShapeDtypeStruct((bp, out_f), jnp.float32)]
    else:
        # Identity act_fn + no bias -> activation == pre_activation: emit only one
        # output (halves HBM writeback of this memory-bound kernel).
        out_specs = [blk_out]
        out_shape = [jax.ShapeDtypeStruct((bp, out_f), jnp.float32)]

    outs = pl.pallas_call(
        kernel,
        grid=(nb,),
        in_specs=in_specs,
        out_specs=out_specs,
        out_shape=out_shape,
        compiler_params=_compiler_params(),
    )(*inputs)

    if has_bias:
        act, pre = outs
    else:
        pre = outs[0]
        act = pre
    if bp != batch:
        act, pre = act[:batch], pre[:batch]
    return act, pre


# ---------------------------------------------------------------------------
# Shared ADNN step math (traced inside both ADNN kernels)
# ---------------------------------------------------------------------------
def _adnn_math(pre, act, lam, prev, w, wT, old, rho):
    """One alternating-direction step (identity act_fn).  Elementwise in f32,
    both matmuls fed to the MXU in bf16 with f32 accumulation."""
    inv_rho = 1.0 / rho
    inv_1p_rho = 1.0 / (1.0 + rho)

    lam_new = lam + rho * (pre - act)                   # dual (lambdas) update
    tmp = act - inv_rho * lam_new
    # _inverse_operator(tmp, W) = tmp @ W : (tb,out) @ (out,in) -> (tb,in)
    inv = jnp.dot(tmp.astype(w.dtype), w, preferred_element_type=jnp.float32)
    resid = (prev - inv).astype(wT.dtype)
    # _operator(resid, W) = resid @ W^T : (tb,in) @ (in,out), wT pre-transposed
    op = jnp.dot(resid, wT, preferred_element_type=jnp.float32)
    new_pre = tmp + op * inv_1p_rho
    new_act = new_pre + inv_rho * lam_new
    if old is not None:
        new_act = (old + rho * new_act) * inv_1p_rho
    # act_fn default is identity
    return new_pre, new_act, lam_new


def _adnn_per_row_bytes(in_f, out_f, use_old):
    # pre/act/lam[/old] inputs + 3 outputs, all f32, all double-buffered; prev is in_f.
    n_out_cols = (4 if use_old else 3) + 3
    return 2 * 4 * (n_out_cols * out_f + in_f)


# ---------------------------------------------------------------------------
# Kernel 2: one alternating-direction (ADNN) step (unroll_step >= 1)
# ---------------------------------------------------------------------------
def _adnn_step_kernel(*refs, rho, use_old):
    if use_old:
        (pre_ref, act_ref, prev_ref, lam_ref, w_ref, wt_ref, old_ref,
         new_act_ref, new_pre_ref, new_lam_ref) = refs
    else:
        (pre_ref, act_ref, prev_ref, lam_ref, w_ref, wt_ref,
         new_act_ref, new_pre_ref, new_lam_ref) = refs
        old_ref = None

    w = w_ref[...]                        # bf16, stays resident in VMEM
    wT = wt_ref[...]
    old = old_ref[...].astype(jnp.float32) if use_old else None

    new_pre, new_act, lam_new = _adnn_math(
        pre_ref[...].astype(jnp.float32), act_ref[...].astype(jnp.float32),
        lam_ref[...].astype(jnp.float32), prev_ref[...].astype(jnp.float32),
        w, wT, old, rho)

    new_act_ref[...] = new_act.astype(new_act_ref.dtype)
    new_pre_ref[...] = new_pre.astype(new_pre_ref.dtype)
    new_lam_ref[...] = lam_new.astype(new_lam_ref.dtype)


def adnn_step(pre_activation, activation, prev_activation, lambdas, w, wT, rho,
              old_activation=None):
    batch, out_f = pre_activation.shape
    in_f = prev_activation.shape[1]
    use_old = old_activation is not None

    weight_bytes = 2 * (w.size * w.dtype.itemsize + wT.size * wT.dtype.itemsize)
    tile_b = _pick_tile_b(batch, _adnn_per_row_bytes(in_f, out_f, use_old),
                          weight_bytes)

    pre_p = _pad_batch(pre_activation.astype(jnp.float32), tile_b)
    act_p = _pad_batch(activation.astype(jnp.float32), tile_b)
    prev_p = _pad_batch(prev_activation.astype(jnp.float32), tile_b)
    lam_p = _pad_batch(lambdas.astype(jnp.float32), tile_b)
    bp = pre_p.shape[0]
    nb = bp // tile_b

    kernel = functools.partial(_adnn_step_kernel, rho=float(rho), use_old=use_old)

    blk_out = pl.BlockSpec((tile_b, out_f), lambda i: (i, 0))
    blk_in = pl.BlockSpec((tile_b, in_f), lambda i: (i, 0))
    blk_w = pl.BlockSpec((out_f, in_f), lambda i: (0, 0))    # resident W
    blk_wt = pl.BlockSpec((in_f, out_f), lambda i: (0, 0))   # resident W^T

    inputs = [pre_p, act_p, prev_p, lam_p, w, wT]
    in_specs = [blk_out, blk_out, blk_in, blk_out, blk_w, blk_wt]
    if use_old:
        inputs.append(_pad_batch(old_activation.astype(jnp.float32), tile_b))
        in_specs.append(blk_out)

    new_act, new_pre, new_lam = pl.pallas_call(
        kernel,
        grid=(nb,),
        in_specs=in_specs,
        out_specs=[blk_out, blk_out, blk_out],
        out_shape=[jax.ShapeDtypeStruct((bp, out_f), jnp.float32)] * 3,
        compiler_params=_compiler_params(),
    )(*inputs)
    if bp != batch:
        new_act, new_pre, new_lam = new_act[:batch], new_pre[:batch], new_lam[:batch]
    return new_act, new_pre, new_lam


# ---------------------------------------------------------------------------
# Kernel 3: fused unroll — N ADNN steps in one pallas_call.  W / W^T / prev (and
# optional old) stay resident in VMEM across all steps; state is carried in f32.
# ---------------------------------------------------------------------------
def _adnn_unroll_kernel(*refs, rho, n_steps, use_old):
    if use_old:
        (pre_ref, act_ref, prev_ref, lam_ref, w_ref, wt_ref, old_ref,
         new_act_ref, new_pre_ref, new_lam_ref) = refs
    else:
        (pre_ref, act_ref, prev_ref, lam_ref, w_ref, wt_ref,
         new_act_ref, new_pre_ref, new_lam_ref) = refs
        old_ref = None

    w = w_ref[...]                        # loaded once, stays in VMEM
    wT = wt_ref[...]
    prev = prev_ref[...].astype(jnp.float32)
    old = old_ref[...].astype(jnp.float32) if use_old else None

    def step(_, carry):
        pre, act, lam = carry
        return _adnn_math(pre, act, lam, prev, w, wT, old, rho)

    init = (pre_ref[...].astype(jnp.float32),
            act_ref[...].astype(jnp.float32),
            lam_ref[...].astype(jnp.float32))
    # Steps are serially dependent: a deep unroll gains no overlap, so cap the
    # unroll factor to bound vreg live ranges / compile time.
    unroll = 2 if n_steps > 4 else max(int(n_steps), 1)
    pre, act, lam = lax.fori_loop(0, n_steps, step, init, unroll=unroll)

    new_act_ref[...] = act.astype(new_act_ref.dtype)
    new_pre_ref[...] = pre.astype(new_pre_ref.dtype)
    new_lam_ref[...] = lam.astype(new_lam_ref.dtype)


def adnn_unroll(pre_activation, activation, prev_activation, lambdas, w, wT, rho,
                n_steps, old_activation=None):
    batch, out_f = pre_activation.shape
    in_f = prev_activation.shape[1]
    use_old = old_activation is not None

    weight_bytes = 2 * (w.size * w.dtype.itemsize + wT.size * wT.dtype.itemsize)
    tile_b = _pick_tile_b(batch, _adnn_per_row_bytes(in_f, out_f, use_old),
                          weight_bytes)

    pre_p = _pad_batch(pre_activation.astype(jnp.float32), tile_b)
    act_p = _pad_batch(activation.astype(jnp.float32), tile_b)
    prev_p = _pad_batch(prev_activation.astype(jnp.float32), tile_b)
    lam_p = _pad_batch(lambdas.astype(jnp.float32), tile_b)
    bp = pre_p.shape[0]
    nb = bp // tile_b

    kernel = functools.partial(_adnn_unroll_kernel, rho=float(rho),
                               n_steps=int(n_steps), use_old=use_old)

    blk_out = pl.BlockSpec((tile_b, out_f), lambda i: (i, 0))
    blk_in = pl.BlockSpec((tile_b, in_f), lambda i: (i, 0))
    blk_w = pl.BlockSpec((out_f, in_f), lambda i: (0, 0))
    blk_wt = pl.BlockSpec((in_f, out_f), lambda i: (0, 0))

    inputs = [pre_p, act_p, prev_p, lam_p, w, wT]
    in_specs = [blk_out, blk_out, blk_in, blk_out, blk_w, blk_wt]
    if use_old:
        inputs.append(_pad_batch(old_activation.astype(jnp.float32), tile_b))
        in_specs.append(blk_out)

    new_act, new_pre, new_lam = pl.pallas_call(
        kernel,
        grid=(nb,),
        in_specs=in_specs,
        out_specs=[blk_out, blk_out, blk_out],
        out_shape=[jax.ShapeDtypeStruct((bp, out_f), jnp.float32)] * 3,
        compiler_params=_compiler_params(),
    )(*inputs)
    if bp != batch:
        new_act, new_pre, new_lam = new_act[:batch], new_pre[:batch], new_lam[:batch]
    return new_act, new_pre, new_lam


# ---------------------------------------------------------------------------
# Python-side module mirroring _ADNNBaseCell (linear instantiation)
# ---------------------------------------------------------------------------
class ADNNLinearCell:
    """Linear instantiation of _ADNNBaseCell:
         _operator(x, W)         = x @ W.T   (torch.nn.functional.linear)
         _inverse_operator(y, W) = y @ W
       act_fn is the default identity activation."""

    def __init__(self, in_features, out_features, key, bias=True,
                 bias_behaviour='-', rho=1.0):
        if bias_behaviour not in ('-', '+'):
            raise ValueError("bias_behaviour must be '-' or '+'")
        self.bias_sign = 1.0 if bias_behaviour == '+' else -1.0
        self.rho = float(rho)
        self.in_features = in_features
        self.out_features = out_features
        self.lambdas = None
        self.input_shape = None

        kw, kb = jax.random.split(key)
        # He uniform init with a=sqrt(5)  =>  bound = 1/sqrt(fan_in)
        bound = 1.0 / math.sqrt(in_features)
        self.weight = jax.random.uniform(kw, (out_features, in_features),
                                         jnp.float32, -bound, bound)
        # bf16 copies fed to the MXU; wT is pre-transposed once so neither the
        # _operator nor the _inverse_operator matmul needs an in-kernel transpose.
        self.w_mxu = self.weight.astype(_MXU_DTYPE)
        self.wT_mxu = jnp.asarray(self.weight.T, dtype=_MXU_DTYPE)
        if bias:
            self.bias = jax.random.uniform(kb, (out_features,),
                                           jnp.float32, -bound, bound)
        else:
            self.bias = None

    def forward(self, input, pre_activation=None, activation=None,
                prev_activation=None, unroll_step=0, old_activation=None):
        """One call per step -- exactly the original module's semantics."""
        if self.input_shape is None:
            self.input_shape = input.shape
        if unroll_step == 0:
            activation, pre_activation = linear_forward(
                input, self.wT_mxu, self.bias, self.bias_sign)
        else:
            if unroll_step == 1:
                self.lambdas = jnp.zeros(activation.shape, dtype=jnp.float32)
            activation, pre_activation, self.lambdas = adnn_step(
                pre_activation, activation, prev_activation, self.lambdas,
                self.w_mxu, self.wT_mxu, self.rho, old_activation)
        if (pre_activation is None and activation is None
                and prev_activation is None and not unroll_step):
            return activation
        return activation, pre_activation

    def unrolled_forward(self, input, n_steps, old_activation=None):
        """Fused path: plain forward + n_steps ADNN iterations in a single kernel,
        for the single-cell case where prev_activation stays fixed to `input`
        (and the optional old_activation, if given, is applied every step)."""
        activation, pre_activation = linear_forward(
            input, self.wT_mxu, self.bias, self.bias_sign)
        if n_steps == 0:
            return activation, pre_activation
        self.lambdas = jnp.zeros(activation.shape, dtype=jnp.float32)
        activation, pre_activation, self.lambdas = adnn_unroll(
            pre_activation, activation, input, self.lambdas,
            self.w_mxu, self.wT_mxu, self.rho, n_steps, old_activation)
        return activation, pre_activation


# ---------------------------------------------------------------------------
# Pure-JAX reference (mimics the kernels' bf16 MXU casts, f32 accumulation)
# ---------------------------------------------------------------------------
def _ref_linear(x, wT_lo, b, bias_sign):
    pre = jnp.dot(x.astype(wT_lo.dtype), wT_lo, preferred_element_type=jnp.float32)
    act = pre + (bias_sign * b[None, :] if b is not None else 0.0)
    return act, pre


def _ref_adnn(pre, act, prev, lam, w_lo, wT_lo, rho, old=None):
    lam_new = lam + rho * (pre - act)
    tmp = act - lam_new / rho
    inv = jnp.dot(tmp.astype(w_lo.dtype), w_lo, preferred_element_type=jnp.float32)
    resid = (prev - inv).astype(wT_lo.dtype)
    op = jnp.dot(resid, wT_lo, preferred_element_type=jnp.float32)
    new_pre = tmp + op / (1.0 + rho)
    new_act = new_pre + lam_new / rho
    if old is not None:
        new_act = (old + rho * new_act) / (1.0 + rho)
    return new_act, new_pre, lam_new


if __name__ == "__main__":
    key = jax.random.PRNGKey(0)
    k_param, k_param2, k_x = jax.random.split(key, 3)

    # Lane / MXU-friendly small shapes: feature dims multiples of 256, batch
    # splits into two 128-row tiles (keeps both v7x TensorCores busy).
    B, In, Out = 256, 256, 256
    rho = 0.5
    cell = ADNNLinearCell(In, Out, key=k_param, bias=True,
                          bias_behaviour='-', rho=rho)
    x = jax.random.normal(k_x, (B, In), jnp.float32)

    # ---- per-step path (one pallas_call per step, module semantics) --------
    act0, pre0 = cell.forward(x, prev_activation=x, unroll_step=0)
    act1, pre1 = cell.forward(x, pre_activation=pre0, activation=act0,
                              prev_activation=x, unroll_step=1)
    act2, pre2 = cell.forward(x, pre_activation=pre1, activation=act1,
                              prev_activation=x, unroll_step=2,
                              old_activation=act0)

    # ---- fused-unroll path (3 steps in one kernel, weights resident) -------
    lam0 = jnp.zeros((B, Out), jnp.float32)
    f_act, f_pre, f_lam = adnn_unroll(pre0, act0, x, lam0,
                                      cell.w_mxu, cell.wT_mxu, rho, n_steps=3)

    # ---- no-bias forward (single-output kernel path) ------------------------
    cell_nb = ADNNLinearCell(In, Out, key=k_param2, bias=False,
                             bias_behaviour='-', rho=rho)
    act_nb, pre_nb = cell_nb.forward(x, prev_activation=x, unroll_step=0)

    jax.block_until_ready((act0, pre0, act1, pre1, act2, pre2,
                           f_act, f_pre, f_lam, act_nb, pre_nb))

    # ---- correctness checks against a pure-JAX reference -------------------
    r_act0, r_pre0 = _ref_linear(x, cell.wT_mxu, cell.bias, cell.bias_sign)
    lam = jnp.zeros_like(r_pre0)
    r_act1, r_pre1, lam = _ref_adnn(r_pre0, r_act0, x, lam,
                                    cell.w_mxu, cell.wT_mxu, rho)
    r_act2, r_pre2, lam = _ref_adnn(r_pre1, r_act1, x, lam,
                                    cell.w_mxu, cell.wT_mxu, rho, old=r_act0)

    fa, fp, fl = r_act0, r_pre0, jnp.zeros_like(r_pre0)
    for _ in range(3):
        fa, fp, fl = _ref_adnn(fp, fa, x, fl, cell.w_mxu, cell.wT_mxu, rho)

    r_act_nb, r_pre_nb = _ref_linear(x, cell_nb.wT_mxu, None, cell_nb.bias_sign)

    checks = [(act0, r_act0), (pre0, r_pre0),
              (act1, r_act1), (pre1, r_pre1),
              (act2, r_act2), (pre2, r_pre2),
              (f_act, fa), (f_pre, fp), (f_lam, fl),
              (act_nb, r_act_nb), (pre_nb, r_pre_nb)]
    for got, ref in checks:
        assert got.shape == ref.shape, "shape mismatch vs reference"
        assert jnp.allclose(got, ref, atol=1e-2, rtol=1e-2), \
            "mismatch vs reference"

    print("KERNEL_OK")
</pallas_src>

<mosaic_0001>
module attributes {stable_mosaic.version = 11 : i64} {
  func.func @_linear_fwd_kernel(%arg0: i32, %arg1: memref<128x256xf32, #tpu.memory_space<vmem>>, %arg2: memref<256x256xbf16, #tpu.memory_space<vmem>>, %arg3: memref<1x256xf32, #tpu.memory_space<vmem>>, %arg4: memref<128x256xf32, #tpu.memory_space<vmem>>, %arg5: memref<128x256xf32, #tpu.memory_space<vmem>>) attributes {dimension_semantics = [#tpu.dimension_semantics<parallel>], iteration_bounds = array<i64: 2>, scalar_prefetch = 0 : i64, scratch_operands = 0 : i64, tpu.core_type = #tpu.core_type<tc>, window_params = [{transform_indices = @transform_0, window_bounds = array<i64: 128, 256>}, {pipeline_mode = #tpu.pipeline_mode<synchronous>, transform_indices = @transform_1, window_bounds = array<i64: 256, 256>}, {pipeline_mode = #tpu.pipeline_mode<synchronous>, transform_indices = @transform_2, window_bounds = array<i64: 1, 256>}, {transform_indices = @transform_3, window_bounds = array<i64: 128, 256>}, {transform_indices = @transform_4, window_bounds = array<i64: 128, 256>}]} {
    %c0 = arith.constant 0 : index
    %c0_0 = arith.constant 0 : index
    %0 = vector.load %arg1[%c0, %c0_0] : memref<128x256xf32, #tpu.memory_space<vmem>>, vector<128x256xf32>
    %1 = arith.truncf %0 : vector<128x256xf32> to vector<128x256xbf16>
    %c0_1 = arith.constant 0 : index
    %c0_2 = arith.constant 0 : index
    %2 = vector.load %arg2[%c0_1, %c0_2] : memref<256x256xbf16, #tpu.memory_space<vmem>>, vector<256x256xbf16>
    %cst = arith.constant dense<0.000000e+00> : vector<128x256xf32>
    %3 = tpu.matmul %1, %2, %cst {dimension_numbers = #tpu.dot_dimension_numbers<[1], [0], [0], [1], [0, 0, 1, 1], [], []>} : vector<128x256xbf16>, vector<256x256xbf16>, vector<128x256xf32> -> vector<128x256xf32>
    %c0_3 = arith.constant 0 : index
    %c0_4 = arith.constant 0 : index
    %4 = vector.load %arg5[%c0_3, %c0_4] : memref<128x256xf32, #tpu.memory_space<vmem>>, vector<128x256xf32>
    tpu.vector_store %arg5[%c0_3, %c0_4], %3 {strides = array<i32>} : memref<128x256xf32, #tpu.memory_space<vmem>>, vector<128x256xf32>,
    %c0_5 = arith.constant 0 : index
    %c0_6 = arith.constant 0 : index
    %5 = vector.load %arg3[%c0_5, %c0_6] : memref<1x256xf32, #tpu.memory_space<vmem>>, vector<1x256xf32>
    %cst_7 = arith.constant -1.000000e+00 : f32
    %6 = vector.broadcast %cst_7 : f32 to vector<1x256xf32>
    %7 = arith.mulf %6, %5 : vector<1x256xf32>
    %8 = vector.broadcast %7 : vector<1x256xf32> to vector<128x256xf32>
    %9 = arith.addf %3, %8 : vector<128x256xf32>
    %c0_8 = arith.constant 0 : index
    %c0_9 = arith.constant 0 : index
    %10 = vector.load %arg4[%c0_8, %c0_9] : memref<128x256xf32, #tpu.memory_space<vmem>>, vector<128x256xf32>
    tpu.vector_store %arg4[%c0_8, %c0_9], %9 {strides = array<i32>} : memref<128x256xf32, #tpu.memory_space<vmem>>, vector<128x256xf32>,
    return
  }
  func.func @transform_0(%arg0: i32) -> (i32, i32) {
    %c0_i32 = arith.constant 0 : i32
    %c0_i32_0 = arith.constant 0 : i32
    return %arg0, %c0_i32 : i32, i32
  }
  func.func @transform_1(%arg0: i32) -> (i32, i32) {
    %c0_i32 = arith.constant 0 : i32
    %c0_i32_0 = arith.constant 0 : i32
    %c0_i32_1 = arith.constant 0 : i32
    return %c0_i32, %c0_i32_0 : i32, i32
  }
  func.func @transform_2(%arg0: i32) -> (i32, i32) {
    %c0_i32 = arith.constant 0 : i32
    %c0_i32_0 = arith.constant 0 : i32
    %c0_i32_1 = arith.constant 0 : i32
    return %c0_i32, %c0_i32_0 : i32, i32
  }
  func.func @transform_3(%arg0: i32) -> (i32, i32) {
    %c0_i32 = arith.constant 0 : i32
    %c0_i32_0 = arith.constant 0 : i32
    return %arg0, %c0_i32 : i32, i32
  }
  func.func @transform_4(%arg0: i32) -> (i32, i32) {
    %c0_i32 = arith.constant 0 : i32
    %c0_i32_0 = arith.constant 0 : i32
    return %arg0, %c0_i32 : i32, i32
  }
}

</mosaic_0001>

<llo_original>
// kernel: tpu_custom_call.1
$region0: #{tpu_custom_call.1}
  #allocation0 [shape = 'u32[]', space=smem, size = 0x4, offset = 0x4, fixed_abs, tag = 'smem constant byte address 0x4 - core index']
  #allocation1 [shape = 'u32[72,128]{1,0:T(1,128)}', space=vmem, size = 0x9000, scoped, tag = 'internal scratch']
  %s0 = inlined_call_operand.hbm [shape: f32[256,256], index: 0, kind: input, shape index: {}]
  %s1 = inlined_call_operand.hbm [shape: bf16[256,256], index: 1, kind: input, shape index: {}]
  %s2 = inlined_call_operand.hbm [shape: f32[1,256], index: 2, kind: input, shape index: {}]
  %s3 = inlined_call_operand.hbm [shape: f32[256,256], index: 3, kind: output, shape index: {0}]
  %s4 = inlined_call_operand.hbm [shape: f32[256,256], index: 4, kind: output, shape index: {1}]
  %5 = xla_tuple %s3, %s4
  %s6 = sld [smem:[#allocation0]]
  $region65: #{tpu_custom_call.1} parent=0
    _
  %s8 = ssub.s32 1, %s6
  %s9 = scalar_select 0, %s8, %s6
  $region1: #{tpu_custom_call.1} parent=0
    #allocation2 [shape = 'u8[262144]{0}', space=vmem, size = 0x40000, scoped, tag = 'input window, operand 0']
    #allocation3 [shape = 's32[2]{0}', space=sflag, size = 0x8, scoped, tag = 'scoped memory for tpu_custom_call.1']
    #allocation4 [shape = 's32[2]{0}', space=sflag, size = 0x8, scoped, tag = 'scoped memory for tpu_custom_call.1']
    #allocation5 [shape = 'u8[131072]{0}', space=vmem, size = 0x20000, scoped, tag = 'input window, operand 1, single buffered']
    #allocation6 [shape = 's32[1]{0}', space=sflag, size = 0x4, scoped, tag = 'scoped memory for tpu_custom_call.1']
    #allocation7 [shape = 'u8[1024]{0}', space=vmem, size = 0x400, scoped, tag = 'input window, operand 2, single buffered']
    #allocation8 [shape = 'u8[262144]{0}', space=vmem, size = 0x40000, scoped, tag = 'output window, operand 0']
    #allocation9 [shape = 'u8[262144]{0}', space=vmem, size = 0x40000, scoped, tag = 'output window, operand 1']
    #allocation10 [shape = 's32[2]{0}', space=sflag, size = 0x8, scoped, tag = 'scoped memory for tpu_custom_call.1']
    %10 = vsyncpa [#allocation3], 0
    %s11 = scalar_lea.sflag [#allocation3], 1
    %12 = vsyncpa %s11, 0
    %13 = vsyncpa [#allocation6], 0
    %14 = vsyncpa [#allocation4], 0
    %s15 = scalar_lea.sflag [#allocation4], 1
    %16 = vsyncpa %s15, 0
    %17 = vsyncpa [#allocation10], 0
    %s18 = scalar_lea.sflag [#allocation10], 1
    %19 = vsyncpa %s18, 0
    loop: start=0, step=1, limit=4
    $region2: #{tpu_custom_call.1} parent=1 // loop_pre_header
      _
    $region3: #{tpu_custom_call.1} parent=1 // loop_header
      %s21 = sphi 0, %s25
      %p22 = scmp.ge.s32.totalorder %s21, 4
      %s31 = sphi 0, %s33
      %s34 = sphi 0, %s31
      %s35 = sphi 0, %s34
      %s51 = sphi 0, %s35
      %s55 = sphi 0, %s55
      %s57 = sphi 0, %s55
      %s58 = sphi 0, %s57
      %s72 = sphi 0, %s58
      %s76 = sphi 0, %s76
      %s78 = sphi 0, %s76
      %s79 = sphi 0, %s78
      %s93 = sphi 0, %s79
      %s99 = sphi 0, %s101
      %s102 = sphi 0, %s99
      %s103 = sphi 0, %s102
      %s119 = sphi 0, %s103
      %s125 = sphi 0, %s127
      %s128 = sphi 0, %s125
      %s129 = sphi 0, %s128
      %s145 = sphi 0, %s129
    $region4: #{tpu_custom_call.1} parent=1 // loop_header_branch
      %24 = sbr.rel (%p22) target = $region8
    $region5: #{tpu_custom_call.1} parent=1 // loop_body
      %s26 = ssub.s32 %s21, 1
      %s27 = ssub.s32 %s21, 2
      %s28 = sadd.s32 %s21, 1
      %s29 = ssub.s32 %s21, %s28
      %p30 = scmp.eq.s32.totalorder %s29, 0
      %s32 = sadd.s32 %s31, 1
      %s33 = scalar_select %p30, %s31, %s32
      %p36 = pneg %p30
      %p37 = scmp.eq.s32.totalorder %s21, 1
      %p38 = por %p36, %p37
      %p39 = scmp.ne.s32.totalorder %s31, %s34
      %p40 = scmp.eq.s32.totalorder %s21, 0
      %p41 = por %p39, %p40
      %p42 = scmp.ne.s32.totalorder %s31, %s34
      %p43 = scmp.eq.s32.totalorder %s26, 1
      %p44 = por %p42, %p43
      %p45 = scmp.ne.s32.totalorder %s34, %s35
      %p46 = scmp.eq.s32.totalorder %s26, 0
      %p47 = por %p45, %p46
      %p48 = scmp.ne.s32.totalorder %s34, %s35
      %p49 = scmp.eq.s32.totalorder %s27, 1
      %p50 = por %p48, %p49
      %p52 = scmp.ne.s32.totalorder %s35, %s51
      %p53 = scmp.eq.s32.totalorder %s27, 0
      %p54 = por %p52, %p53
      %s56 = sadd.s32 %s55, 1
      %p59 = scmp.eq.s32.totalorder %s21, 1
      %p60 = scmp.ne.s32.totalorder %s55, %s57
      %p61 = scmp.eq.s32.totalorder %s21, 0
      %p62 = por %p60, %p61
      %p63 = scmp.ne.s32.totalorder %s55, %s57
      %p64 = scmp.eq.s32.totalorder %s26, 1
      %p65 = por %p63, %p64
      %p66 = scmp.ne.s32.totalorder %s57, %s58
      %p67 = scmp.eq.s32.totalorder %s26, 0
      %p68 = por %p66, %p67
      %p69 = scmp.ne.s32.totalorder %s57, %s58
      %p70 = scmp.eq.s32.totalorder %s27, 1
      %p71 = por %p69, %p70
      %p73 = scmp.ne.s32.totalorder %s58, %s72
      %p74 = scmp.eq.s32.totalorder %s27, 0
      %p75 = por %p73, %p74
      %s77 = sadd.s32 %s76, 1
      %p80 = scmp.eq.s32.totalorder %s21, 1
      %p81 = scmp.ne.s32.totalorder %s76, %s78
      %p82 = scmp.eq.s32.totalorder %s21, 0
      %p83 = por %p81, %p82
      %p84 = scmp.ne.s32.totalorder %s76, %s78
      %p85 = scmp.eq.s32.totalorder %s26, 1
      %p86 = por %p84, %p85
      %p87 = scmp.ne.s32.totalorder %s78, %s79
      %p88 = scmp.eq.s32.totalorder %s26, 0
      %p89 = por %p87, %p88
      %p90 = scmp.ne.s32.totalorder %s78, %s79
      %p91 = scmp.eq.s32.totalorder %s27, 1
      %p92 = por %p90, %p91
      %p94 = scmp.ne.s32.totalorder %s79, %s93
      %p95 = scmp.eq.s32.totalorder %s27, 0
      %p96 = por %p94, %p95
      %s97 = ssub.s32 %s21, %s28
      %p98 = scmp.eq.s32.totalorder %s97, 0
      %s100 = sadd.s32 %s99, 1
      %s101 = scalar_select %p98, %s99, %s100
      %p104 = pneg %p98
      %p105 = scmp.eq.s32.totalorder %s21, 1
      %p106 = por %p104, %p105
      %p107 = scmp.ne.s32.totalorder %s99, %s102
      %p108 = scmp.eq.s32.totalorder %s21, 0
      %p109 = por %p107, %p108
      %p110 = scmp.ne.s32.totalorder %s99, %s102
      %p111 = scmp.eq.s32.totalorder %s26, 1
      %p112 = por %p110, %p111
      %p113 = scmp.ne.s32.totalorder %s102, %s103
      %p114 = scmp.eq.s32.totalorder %s26, 0
      %p115 = por %p113, %p114
      %p116 = scmp.ne.s32.totalorder %s102, %s103
      %p117 = scmp.eq.s32.totalorder %s27, 1
      %p118 = por %p116, %p117
      %p120 = scmp.ne.s32.totalorder %s103, %s119
      %p121 = scmp.eq.s32.totalorder %s27, 0
      %p122 = por %p120, %p121
      %s123 = ssub.s32 %s21, %s28
      %p124 = scmp.eq.s32.totalorder %s123, 0
      %s126 = sadd.s32 %s125, 1
      %s127 = scalar_select %p124, %s125, %s126
      %p130 = pneg %p124
      %p131 = scmp.eq.s32.totalorder %s21, 1
      %p132 = por %p130, %p131
      %p133 = scmp.ne.s32.totalorder %s125, %s128
      %p134 = scmp.eq.s32.totalorder %s21, 0
      %p135 = por %p133, %p134
      %p136 = scmp.ne.s32.totalorder %s125, %s128
      %p137 = scmp.eq.s32.totalorder %s26, 1
      %p138 = por %p136, %p137
      %p139 = scmp.ne.s32.totalorder %s128, %s129
      %p140 = scmp.eq.s32.totalorder %s26, 0
      %p141 = por %p139, %p140
      %p142 = scmp.ne.s32.totalorder %s128, %s129
      %p143 = scmp.eq.s32.totalorder %s27, 1
      %p144 = por %p142, %p143
      %p146 = scmp.ne.s32.totalorder %s129, %s145
      %p147 = scmp.eq.s32.totalorder %s27, 0
      %p148 = por %p146, %p147
      %p149 = scmp.le.s32.totalorder 1, %s21
      %p150 = scmp.lt.s32.totalorder %s21, 3
      %p151 = pnand %p149, %p150
      %p152 = pneg %p151
      // Predicated region
      $region9: #{tpu_custom_call.1} parent=5 // pred_check
        _
      $region10: #{tpu_custom_call.1} parent=5 // pred_check_branch
        %154 = sbr.rel (%p151) target = $region12
      $region11: #{tpu_custom_call.1} parent=5 // pred_region
        %s155 = ssub.s32 %s21, 1
        // Predicated region
        $region13: #{tpu_custom_call.1} parent=11 // pred_check
          %p156 = pneg %p68
        $region14: #{tpu_custom_call.1} parent=11 // pred_check_branch
          %158 = sbr.rel (%p156) target = $region16
        $region15: #{tpu_custom_call.1} parent=11 // pred_region
          %160 = vsyncadd [#allocation6], 0
          %s161 = sshll.u32 %s1, 4
          %s162 = int_to_ptr.hbm [resolvable:$true] %s161
          %s163 = sshll.u32 [#allocation5], 4
          %s164 = int_to_ptr.vmem [resolvable:$true] %s163
          %169 = dma.hbm_to_vmem [thread:$0]  %s162, 4096, %s164, [#allocation6], 128, 128, 8
        $region16: #{tpu_custom_call.1} parent=11 // pred_fallthru
          _
        // Predicated region
        $region17: #{tpu_custom_call.1} parent=11 // pred_check
          %p170 = pneg %p89
        $region18: #{tpu_custom_call.1} parent=11 // pred_check_branch
          %172 = sbr.rel (%p170) target = $region20
        $region19: #{tpu_custom_call.1} parent=11 // pred_region
          %174 = vsyncadd [#allocation6], 0
          %s176 = sshll.u32 %s2, 4
          %s177 = int_to_ptr.hbm [resolvable:$true] %s176
          %s178 = sshll.u32 [#allocation7], 4
          %s179 = int_to_ptr.vmem [resolvable:$true] %s178
          %181 = dma.hbm_to_vmem [thread:$0]  %s177, 32, %s179, [#allocation6]
        $region20: #{tpu_custom_call.1} parent=11 // pred_fallthru
          _
      $region12: #{tpu_custom_call.1} parent=5 // pred_fallthru
        _
      %p182 = scmp.lt.s32.totalorder %s21, 2
      // Predicated region
      $region21: #{tpu_custom_call.1} parent=5 // pred_check
        %p183 = pneg %p182
      $region22: #{tpu_custom_call.1} parent=5 // pred_check_branch
        %185 = sbr.rel (%p183) target = $region24
      $region23: #{tpu_custom_call.1} parent=5 // pred_region
        // Predicated region
        $region25: #{tpu_custom_call.1} parent=23 // pred_check
          %p186 = pneg %p41
        $region26: #{tpu_custom_call.1} parent=23 // pred_check_branch
          %188 = sbr.rel (%p186) target = $region28
        $region27: #{tpu_custom_call.1} parent=23 // pred_region
          %s189 = sand.u32 %s31, 1
          %s190 = scalar_lea.sflag [#allocation3], %s189
          %s191 = sand.u32 %s31, 1
          %s192 = smul.addr %s191, 256
          %s193 = scalar_lea.vmem [#allocation2], %s192
          %s194 = smul.u32 16, %s21
          %196 = vsyncadd %s190, 0
          %s197 = smul.addr %s194, 2
          %s198 = smul.addr %s197, 8
          %s199 = scalar_lea.hbm %s0, %s198
          %s200 = sshll.u32 %s199, 4
          %s201 = int_to_ptr.hbm [resolvable:$true] %s200
          %s202 = sshll.u32 %s193, 4
          %s203 = int_to_ptr.vmem [resolvable:$true] %s202
          %208 = dma.hbm_to_vmem [thread:$0]  %s201, 4096, %s203, %s190, 256, 256, 16
        $region28: #{tpu_custom_call.1} parent=23 // pred_fallthru
          _
      $region24: #{tpu_custom_call.1} parent=5 // pred_fallthru
        _
      %p209 = scmp.le.s32.totalorder 1, %s21
      %p210 = scmp.lt.s32.totalorder %s21, 3
      %p211 = pnand %p209, %p210
      %p212 = pneg %p211
      // Predicated region
      $region29: #{tpu_custom_call.1} parent=5 // pred_check
        _
      $region30: #{tpu_custom_call.1} parent=5 // pred_check_branch
        %214 = sbr.rel (%p211) target = $region32
      $region31: #{tpu_custom_call.1} parent=5 // pred_region
        %s215 = ssub.s32 %s21, 1
        %s216 = sand.u32 %s34, 1
        %s217 = scalar_lea.sflag [#allocation3], %s216
        %s218 = sand.u32 %s34, 1
        %s219 = smul.addr %s218, 256
        %s220 = scalar_lea.vmem [#allocation2], %s219
        // Predicated region
        $region33: #{tpu_custom_call.1} parent=31 // pred_check
          %p221 = pneg %p47
        $region34: #{tpu_custom_call.1} parent=31 // pred_check_branch
          %223 = sbr.rel (%p221) target = $region36
        $region35: #{tpu_custom_call.1} parent=31 // pred_region
          %225 = dma.done %s217, 4096
        $region36: #{tpu_custom_call.1} parent=31 // pred_fallthru
          _
        // Predicated region
        $region37: #{tpu_custom_call.1} parent=31 // pred_check
          %p226 = pneg %p68
        $region38: #{tpu_custom_call.1} parent=31 // pred_check_branch
          %228 = sbr.rel (%p226) target = $region40
        $region39: #{tpu_custom_call.1} parent=31 // pred_region
          %230 = dma.done [#allocation6], 4096
        $region40: #{tpu_custom_call.1} parent=31 // pred_fallthru
          _
        // Predicated region
        $region41: #{tpu_custom_call.1} parent=31 // pred_check
          %p231 = pneg %p89
        $region42: #{tpu_custom_call.1} parent=31 // pred_check_branch
          %233 = sbr.rel (%p231) target = $region44
        $region43: #{tpu_custom_call.1} parent=31 // pred_region
          %235 = dma.done [#allocation6], 32
        $region44: #{tpu_custom_call.1} parent=31 // pred_fallthru
          _
        %s236 = sand.u32 %s34, 1
        %s237 = scalar_lea.sflag [#allocation3], %s236
        %s238 = sand.u32 %s34, 1
        %s239 = smul.addr %s238, 256
        %s240 = scalar_lea.vmem [#allocation2], %s239
        %p241 = pneg %p47
        %p242 = pneg %p44
        %p243 = pneg %p68
        %p244 = pneg %p65
        %p245 = pneg %p89
        %p246 = pneg %p86
        %p247 = pneg %p115
        %p248 = pneg %p112
        %s249 = sand.u32 %s102, 1
        %s250 = scalar_lea.sflag [#allocation4], %s249
        %s251 = sand.u32 %s102, 1
        %s252 = smul.addr %s251, 256
        %s253 = scalar_lea.vmem [#allocation8], %s252
        %p254 = pneg %p141
        %p255 = pneg %p138
        %s256 = sand.u32 %s128, 1
        %s257 = scalar_lea.sflag [#allocation10], %s256
        %s258 = sand.u32 %s128, 1
        %s259 = smul.addr %s258, 256
        %s260 = scalar_lea.vmem [#allocation9], %s259
        %s261 = smul.u32 16, %s26
        %s262 = smul.u32 16, %s26
        %s263 = smul.u32 16, %s26
        %v264 = vld [vmem:[%s220] sm:$0xff]
        %v265 = vld [vmem:[%s220 + $0x8] sm:$0xff]
        %v266 = vld [vmem:[%s220 + $0x10] sm:$0xff]
        %v267 = vld [vmem:[%s220 + $0x18] sm:$0xff]
        %v268 = vld [vmem:[%s220 + $0x20] sm:$0xff]
        %v269 = vld [vmem:[%s220 + $0x28] sm:$0xff]
        %v270 = vld [vmem:[%s220 + $0x30] sm:$0xff]
        %v271 = vld [vmem:[%s220 + $0x38] sm:$0xff]
        %v272 = vld [vmem:[%s220 + $0x40] sm:$0xff]
        %v273 = vld [vmem:[%s220 + $0x48] sm:$0xff]
        %v274 = vld [vmem:[%s220 + $0x50] sm:$0xff]
        %v275 = vld [vmem:[%s220 + $0x58] sm:$0xff]
        %v276 = vld [vmem:[%s220 + $0x60] sm:$0xff]
        %v277 = vld [vmem:[%s220 + $0x68] sm:$0xff]
        %v278 = vld [vmem:[%s220 + $0x70] sm:$0xff]
        %v279 = vld [vmem:[%s220 + $0x78] sm:$0xff]
        %v280 = vld [vmem:[%s220 + $0x80] sm:$0xff]
        %v281 = vld [vmem:[%s220 + $0x88] sm:$0xff]
        %v282 = vld [vmem:[%s220 + $0x90] sm:$0xff]
        %v283 = vld [vmem:[%s220 + $0x98] sm:$0xff]
        %v284 = vld [vmem:[%s220 + $0xa0] sm:$0xff]
        %v285 = vld [vmem:[%s220 + $0xa8] sm:$0xff]
        %v286 = vld [vmem:[%s220 + $0xb0] sm:$0xff]
        %v287 = vld [vmem:[%s220 + $0xb8] sm:$0xff]
        %v288 = vld [vmem:[%s220 + $0xc0] sm:$0xff]
        %v289 = vld [vmem:[%s220 + $0xc8] sm:$0xff]
        %v290 = vld [vmem:[%s220 + $0xd0] sm:$0xff]
        %v291 = vld [vmem:[%s220 + $0xd8] sm:$0xff]
        %v292 = vld [vmem:[%s220 + $0xe0] sm:$0xff]
        %v293 = vld [vmem:[%s220 + $0xe8] sm:$0xff]
        %v294 = vld [vmem:[%s220 + $0xf0] sm:$0xff]
        %v295 = vld [vmem:[%s220 + $0xf8] sm:$0xff]
        %v296 = vpack.c.bf16 %v266, %v264
        %v297 = vpack.c.bf16 %v267, %v265
        %v298 = vpack.c.bf16 %v270, %v268
        %v299 = vpack.c.bf16 %v271, %v269
        %v300 = vpack.c.bf16 %v274, %v272
        %v301 = vpack.c.bf16 %v275, %v273
        %v302 = vpack.c.bf16 %v278, %v276
        %v303 = vpack.c.bf16 %v279, %v277
        %v304 = vpack.c.bf16 %v282, %v280
        %v305 = vpack.c.bf16 %v283, %v281
        %v306 = vpack.c.bf16 %v286, %v284
        %v307 = vpack.c.bf16 %v287, %v285
        %v308 = vpack.c.bf16 %v290, %v288
        %v309 = vpack.c.bf16 %v291, %v289
        %v310 = vpack.c.bf16 %v294, %v292
        %v311 = vpack.c.bf16 %v295, %v293
        %v312 = vld [vmem:[#allocation5] sm:$0xff]
        %v313 = vld [vmem:[#allocation5 + $0x8] sm:$0xff]
        %v314 = vld [vmem:[#allocation5 + $0x10] sm:$0xff]
        %v315 = vld [vmem:[#allocation5 + $0x18] sm:$0xff]
        %v316 = vld [vmem:[#allocation5 + $0x20] sm:$0xff]
        %v317 = vld [vmem:[#allocation5 + $0x28] sm:$0xff]
        %v318 = vld [vmem:[#allocation5 + $0x30] sm:$0xff]
        %v319 = vld [vmem:[#allocation5 + $0x38] sm:$0xff]
        %v320 = vld [vmem:[#allocation5 + $0x40] sm:$0xff]
        %v321 = vld [vmem:[#allocation5 + $0x48] sm:$0xff]
        %v322 = vld [vmem:[#allocation5 + $0x50] sm:$0xff]
        %v323 = vld [vmem:[#allocation5 + $0x58] sm:$0xff]
        %v324 = vld [vmem:[#allocation5 + $0x60] sm:$0xff]
        %v325 = vld [vmem:[#allocation5 + $0x68] sm:$0xff]
        %v326 = vld [vmem:[#allocation5 + $0x70] sm:$0xff]
        %v327 = vld [vmem:[#allocation5 + $0x78] sm:$0xff]
        %v328 = vld [vmem:[#allocation5 + $0x80] sm:$0xff]
        %v329 = vld [vmem:[#allocation5 + $0x88] sm:$0xff]
        %v330 = vld [vmem:[#allocation5 + $0x90] sm:$0xff]
        %v331 = vld [vmem:[#allocation5 + $0x98] sm:$0xff]
        %v332 = vld [vmem:[#allocation5 + $0xa0] sm:$0xff]
        %v333 = vld [vmem:[#allocation5 + $0xa8] sm:$0xff]
        %v334 = vld [vmem:[#allocation5 + $0xb0] sm:$0xff]
        %v335 = vld [vmem:[#allocation5 + $0xb8] sm:$0xff]
        %v336 = vld [vmem:[#allocation5 + $0xc0] sm:$0xff]
        %v337 = vld [vmem:[#allocation5 + $0xc8] sm:$0xff]
        %v338 = vld [vmem:[#allocation5 + $0xd0] sm:$0xff]
        %v339 = vld [vmem:[#allocation5 + $0xd8] sm:$0xff]
        %v340 = vld [vmem:[#allocation5 + $0xe0] sm:$0xff]
        %v341 = vld [vmem:[#allocation5 + $0xe8] sm:$0xff]
        %v342 = vld [vmem:[#allocation5 + $0xf0] sm:$0xff]
        %v343 = vld [vmem:[#allocation5 + $0xf8] sm:$0xff]
        %v376 = vunpack.c.l.b16 %v312
        %v377 = vunpack.c.h.b16 %v312
        %v378 = vunpack.c.l.b16 %v313
        %v379 = vunpack.c.h.b16 %v313
        %v380 = vunpack.c.l.b16 %v314
        %v381 = vunpack.c.h.b16 %v314
        %v382 = vunpack.c.l.b16 %v315
        %v383 = vunpack.c.h.b16 %v315
        %v384 = vunpack.c.l.b16 %v316
        %v385 = vunpack.c.h.b16 %v316
        %v386 = vunpack.c.l.b16 %v317
        %v387 = vunpack.c.h.b16 %v317
        %v388 = vunpack.c.l.b16 %v318
        %v389 = vunpack.c.h.b16 %v318
        %v390 = vunpack.c.l.b16 %v319
        %v391 = vunpack.c.h.b16 %v319
        %v392 = vunpack.c.l.b16 %v320
        %v393 = vunpack.c.h.b16 %v320
        %v394 = vunpack.c.l.b16 %v321
        %v395 = vunpack.c.h.b16 %v321
        %v396 = vunpack.c.l.b16 %v322
        %v397 = vunpack.c.h.b16 %v322
        %v398 = vunpack.c.l.b16 %v323
        %v399 = vunpack.c.h.b16 %v323
        %v400 = vunpack.c.l.b16 %v324
        %v401 = vunpack.c.h.b16 %v324
        %v402 = vunpack.c.l.b16 %v325
        %v403 = vunpack.c.h.b16 %v325
        %v404 = vunpack.c.l.b16 %v326
        %v405 = vunpack.c.h.b16 %v326
        %v406 = vunpack.c.l.b16 %v327
        %v407 = vunpack.c.h.b16 %v327
        %v408 = vunpack.c.l.b16 %v328
        %v409 = vunpack.c.h.b16 %v328
        %v410 = vunpack.c.l.b16 %v329
        %v411 = vunpack.c.h.b16 %v329
        %v412 = vunpack.c.l.b16 %v330
        %v413 = vunpack.c.h.b16 %v330
        %v414 = vunpack.c.l.b16 %v331
        %v415 = vunpack.c.h.b16 %v331
        %v416 = vunpack.c.l.b16 %v332
        %v417 = vunpack.c.h.b16 %v332
        %v418 = vunpack.c.l.b16 %v333
        %v419 = vunpack.c.h.b16 %v333
        %v420 = vunpack.c.l.b16 %v334
        %v421 = vunpack.c.h.b16 %v334
        %v422 = vunpack.c.l.b16 %v335
        %v423 = vunpack.c.h.b16 %v335
        %v424 = vunpack.c.l.b16 %v336
        %v425 = vunpack.c.h.b16 %v336
        %v426 = vunpack.c.l.b16 %v337
        %v427 = vunpack.c.h.b16 %v337
        %v428 = vunpack.c.l.b16 %v338
        %v429 = vunpack.c.h.b16 %v338
        %v430 = vunpack.c.l.b16 %v339
        %v431 = vunpack.c.h.b16 %v339
        %v432 = vunpack.c.l.b16 %v340
        %v433 = vunpack.c.h.b16 %v340
        %v434 = vunpack.c.l.b16 %v341
        %v435 = vunpack.c.h.b16 %v341
        %v436 = vunpack.c.l.b16 %v342
        %v437 = vunpack.c.h.b16 %v342
        %v438 = vunpack.c.l.b16 %v343
        %v439 = vunpack.c.h.b16 %v343
        %v440 = vpack.c.b16 %v378, %v376
        %v441 = vpack.c.b16 %v379, %v377
        %v442 = vpack.c.b16 %v382, %v380
        %v443 = vpack.c.b16 %v383, %v381
        %v444 = vpack.c.b16 %v386, %v384
        %v445 = vpack.c.b16 %v387, %v385
        %v446 = vpack.c.b16 %v390, %v388
        %v447 = vpack.c.b16 %v391, %v389
        %v448 = vpack.c.b16 %v394, %v392
        %v449 = vpack.c.b16 %v395, %v393
        %v450 = vpack.c.b16 %v398, %v396
        %v451 = vpack.c.b16 %v399, %v397
        %v452 = vpack.c.b16 %v402, %v400
        %v453 = vpack.c.b16 %v403, %v401
        %v454 = vpack.c.b16 %v406, %v404
        %v455 = vpack.c.b16 %v407, %v405
        %v456 = vpack.c.b16 %v410, %v408
        %v457 = vpack.c.b16 %v411, %v409
        %v458 = vpack.c.b16 %v414, %v412
        %v459 = vpack.c.b16 %v415, %v413
        %v460 = vpack.c.b16 %v418, %v416
        %v461 = vpack.c.b16 %v419, %v417
        %v462 = vpack.c.b16 %v422, %v420
        %v463 = vpack.c.b16 %v423, %v421
        %v464 = vpack.c.b16 %v426, %v424
        %v465 = vpack.c.b16 %v427, %v425
        %v466 = vpack.c.b16 %v430, %v428
        %v467 = vpack.c.b16 %v431, %v429
        %v468 = vpack.c.b16 %v434, %v432
        %v469 = vpack.c.b16 %v435, %v433
        %v470 = vpack.c.b16 %v438, %v436
        %v471 = vpack.c.b16 %v439, %v437
        %504 = vmatpush.bf16.msra.mxu0 %v454
        %505 = vmatpush.bf16.msra.mxu0 %v452
        %506 = vmatpush.bf16.msra.mxu0 %v450
        %507 = vmatpush.bf16.msra.mxu0 %v448
        %508 = vmatpush.bf16.msra.mxu0 %v446
        %509 = vmatpush.bf16.msra.mxu0 %v444
        %510 = vmatpush.bf16.msra.mxu0 %v442
        %511 = vmatpush.bf16.msra.mxu0 %v440
        %512 = vmatmul.bf16.gmra.mxu0 %v296
        %v513 = vpop.f32.mrf.mxu0
        %v514 = vadd.f32 0.0, %v513
        %v515 = vpop.f32.mrf.mxu0
        %v516 = vadd.f32 0.0, %v515
        %517 = vmatmul.bf16.gmra.mxu0 %v298
        %v518 = vpop.f32.mrf.mxu0
        %v519 = vadd.f32 0.0, %v518
        %v520 = vpop.f32.mrf.mxu0
        %v521 = vadd.f32 0.0, %v520
        %522 = vmatmul.bf16.gmra.mxu0 %v300
        %v523 = vpop.f32.mrf.mxu0
        %v524 = vadd.f32 0.0, %v523
        %v525 = vpop.f32.mrf.mxu0
        %v526 = vadd.f32 0.0, %v525
        %527 = vmatmul.bf16.gmra.mxu0 %v302
        %v528 = vpop.f32.mrf.mxu0
        %v529 = vadd.f32 0.0, %v528
        %v530 = vpop.f32.mrf.mxu0
        %v531 = vadd.f32 0.0, %v530
        %532 = vmatmul.bf16.gmra.mxu0 %v304
        %v533 = vpop.f32.mrf.mxu0
        %v534 = vadd.f32 0.0, %v533
        %v535 = vpop.f32.mrf.mxu0
        %v536 = vadd.f32 0.0, %v535
        %537 = vmatmul.bf16.gmra.mxu0 %v306
        %v538 = vpop.f32.mrf.mxu0
        %v539 = vadd.f32 0.0, %v538
        %v540 = vpop.f32.mrf.mxu0
        %v541 = vadd.f32 0.0, %v540
        %542 = vmatmul.bf16.gmra.mxu0 %v308
        %v543 = vpop.f32.mrf.mxu0
        %v544 = vadd.f32 0.0, %v543
        %v545 = vpop.f32.mrf.mxu0
        %v546 = vadd.f32 0.0, %v545
        %547 = vmatmul.bf16.gmra.mxu0 %v310
        %v548 = vpop.f32.mrf.mxu0
        %v549 = vadd.f32 0.0, %v548
        %v550 = vpop.f32.mrf.mxu0
        %v551 = vadd.f32 0.0, %v550
        %552 = vdwg.mxu0
        %553 = vmatpush.bf16.msra.mxu0 %v470
        %554 = vmatpush.bf16.msra.mxu0 %v468
        %555 = vmatpush.bf16.msra.mxu0 %v466
        %556 = vmatpush.bf16.msra.mxu0 %v464
        %557 = vmatpush.bf16.msra.mxu0 %v462
        %558 = vmatpush.bf16.msra.mxu0 %v460
        %559 = vmatpush.bf16.msra.mxu0 %v458
        %560 = vmatpush.bf16.msra.mxu0 %v456
        %561 = vmatmul.bf16.gmra.mxu0 %v297
        %v562 = vpop.f32.mrf.mxu0
        %v563 = vadd.f32 %v514, %v562
        %v564 = vpop.f32.mrf.mxu0
        %v565 = vadd.f32 %v516, %v564
        %566 = vmatmul.bf16.gmra.mxu0 %v299
        %v567 = vpop.f32.mrf.mxu0
        %v568 = vadd.f32 %v519, %v567
        %v569 = vpop.f32.mrf.mxu0
        %v570 = vadd.f32 %v521, %v569
        %571 = vmatmul.bf16.gmra.mxu0 %v301
        %v572 = vpop.f32.mrf.mxu0
        %v573 = vadd.f32 %v524, %v572
        %v574 = vpop.f32.mrf.mxu0
        %v575 = vadd.f32 %v526, %v574
        %576 = vmatmul.bf16.gmra.mxu0 %v303
        %v577 = vpop.f32.mrf.mxu0
        %v578 = vadd.f32 %v529, %v577
        %v579 = vpop.f32.mrf.mxu0
        %v580 = vadd.f32 %v531, %v579
        %581 = vmatmul.bf16.gmra.mxu0 %v305
        %v582 = vpop.f32.mrf.mxu0
        %v583 = vadd.f32 %v534, %v582
        %v584 = vpop.f32.mrf.mxu0
        %v585 = vadd.f32 %v536, %v584
        %586 = vmatmul.bf16.gmra.mxu0 %v307
        %v587 = vpop.f32.mrf.mxu0
        %v588 = vadd.f32 %v539, %v587
        %v589 = vpop.f32.mrf.mxu0
        %v590 = vadd.f32 %v541, %v589
        %591 = vmatmul.bf16.gmra.mxu0 %v309
        %v592 = vpop.f32.mrf.mxu0
        %v593 = vadd.f32 %v544, %v592
        %v594 = vpop.f32.mrf.mxu0
        %v595 = vadd.f32 %v546, %v594
        %596 = vmatmul.bf16.gmra.mxu0 %v311
        %v597 = vpop.f32.mrf.mxu0
        %v598 = vadd.f32 %v549, %v597
        %v599 = vpop.f32.mrf.mxu0
        %v600 = vadd.f32 %v551, %v599
        %601 = vdwg.mxu0
        %602 = vmatpush.bf16.msra.mxu0 %v455
        %603 = vmatpush.bf16.msra.mxu0 %v453
        %604 = vmatpush.bf16.msra.mxu0 %v451
        %605 = vmatpush.bf16.msra.mxu0 %v449
        %606 = vmatpush.bf16.msra.mxu0 %v447
        %607 = vmatpush.bf16.msra.mxu0 %v445
        %608 = vmatpush.bf16.msra.mxu0 %v443
        %609 = vmatpush.bf16.msra.mxu0 %v441
        %610 = vmatmul.bf16.gmra.mxu0 %v296
        %v611 = vpop.f32.mrf.mxu0
        %v612 = vadd.f32 0.0, %v611
        %v613 = vpop.f32.mrf.mxu0
        %v614 = vadd.f32 0.0, %v613
        %615 = vmatmul.bf16.gmra.mxu0 %v298
        %v616 = vpop.f32.mrf.mxu0
        %v617 = vadd.f32 0.0, %v616
        %v618 = vpop.f32.mrf.mxu0
        %v619 = vadd.f32 0.0, %v618
        %620 = vmatmul.bf16.gmra.mxu0 %v300
        %v621 = vpop.f32.mrf.mxu0
        %v622 = vadd.f32 0.0, %v621
        %v623 = vpop.f32.mrf.mxu0
        %v624 = vadd.f32 0.0, %v623
        %625 = vmatmul.bf16.gmra.mxu0 %v302
        %v626 = vpop.f32.mrf.mxu0
        %v627 = vadd.f32 0.0, %v626
        %v628 = vpop.f32.mrf.mxu0
        %v629 = vadd.f32 0.0, %v628
        %630 = vmatmul.bf16.gmra.mxu0 %v304
        %v631 = vpop.f32.mrf.mxu0
        %v632 = vadd.f32 0.0, %v631
        %v633 = vpop.f32.mrf.mxu0
        %v634 = vadd.f32 0.0, %v633
        %635 = vmatmul.bf16.gmra.mxu0 %v306
        %v636 = vpop.f32.mrf.mxu0
        %v637 = vadd.f32 0.0, %v636
        %v638 = vpop.f32.mrf.mxu0
        %v639 = vadd.f32 0.0, %v638
        %640 = vmatmul.bf16.gmra.mxu0 %v308
        %v641 = vpop.f32.mrf.mxu0
        %v642 = vadd.f32 0.0, %v641
        %v643 = vpop.f32.mrf.mxu0
        %v644 = vadd.f32 0.0, %v643
        %645 = vmatmul.bf16.gmra.mxu0 %v310
        %v646 = vpop.f32.mrf.mxu0
        %v647 = vadd.f32 0.0, %v646
        %v648 = vpop.f32.mrf.mxu0
        %v649 = vadd.f32 0.0, %v648
        %650 = vdwg.mxu0
        %651 = vmatpush.bf16.msra.mxu0 %v471
        %652 = vmatpush.bf16.msra.mxu0 %v469
        %653 = vmatpush.bf16.msra.mxu0 %v467
        %654 = vmatpush.bf16.msra.mxu0 %v465
        %655 = vmatpush.bf16.msra.mxu0 %v463
        %656 = vmatpush.bf16.msra.mxu0 %v461
        %657 = vmatpush.bf16.msra.mxu0 %v459
        %658 = vmatpush.bf16.msra.mxu0 %v457
        %659 = vmatmul.bf16.gmra.mxu0 %v297
        %v660 = vpop.f32.mrf.mxu0
        %v661 = vadd.f32 %v612, %v660
        %v662 = vpop.f32.mrf.mxu0
        %v663 = vadd.f32 %v614, %v662
        %664 = vmatmul.bf16.gmra.mxu0 %v299
        %v665 = vpop.f32.mrf.mxu0
        %v666 = vadd.f32 %v617, %v665
        %v667 = vpop.f32.mrf.mxu0
        %v668 = vadd.f32 %v619, %v667
        %669 = vmatmul.bf16.gmra.mxu0 %v301
        %v670 = vpop.f32.mrf.mxu0
        %v671 = vadd.f32 %v622, %v670
        %v672 = vpop.f32.mrf.mxu0
        %v673 = vadd.f32 %v624, %v672
        %674 = vmatmul.bf16.gmra.mxu0 %v303
        %v675 = vpop.f32.mrf.mxu0
        %v676 = vadd.f32 %v627, %v675
        %v677 = vpop.f32.mrf.mxu0
        %v678 = vadd.f32 %v629, %v677
        %679 = vmatmul.bf16.gmra.mxu0 %v305
        %v680 = vpop.f32.mrf.mxu0
        %v681 = vadd.f32 %v632, %v680
        %v682 = vpop.f32.mrf.mxu0
        %v683 = vadd.f32 %v634, %v682
        %684 = vmatmul.bf16.gmra.mxu0 %v307
        %v685 = vpop.f32.mrf.mxu0
        %v686 = vadd.f32 %v637, %v685
        %v687 = vpop.f32.mrf.mxu0
        %v688 = vadd.f32 %v639, %v687
        %689 = vmatmul.bf16.gmra.mxu0 %v309
        %v690 = vpop.f32.mrf.mxu0
        %v691 = vadd.f32 %v642, %v690
        %v692 = vpop.f32.mrf.mxu0
        %v693 = vadd.f32 %v644, %v692
        %694 = vmatmul.bf16.gmra.mxu0 %v311
        %v695 = vpop.f32.mrf.mxu0
        %v696 = vadd.f32 %v647, %v695
        %v697 = vpop.f32.mrf.mxu0
        %v698 = vadd.f32 %v649, %v697
        %699 = vdwg.mxu0
        %700 = vst [vmem:[%s260] sm:$0xff] %v563
        %701 = vst [vmem:[%s260 + $0x8] sm:$0xff] %v661
        %702 = vst [vmem:[%s260 + $0x10] sm:$0xff] %v565
        %703 = vst [vmem:[%s260 + $0x18] sm:$0xff] %v663
        %704 = vst [vmem:[%s260 + $0x20] sm:$0xff] %v568
        %705 = vst [vmem:[%s260 + $0x28] sm:$0xff] %v666
        %706 = vst [vmem:[%s260 + $0x30] sm:$0xff] %v570
        %707 = vst [vmem:[%s260 + $0x38] sm:$0xff] %v668
        %708 = vst [vmem:[%s260 + $0x40] sm:$0xff] %v573
        %709 = vst [vmem:[%s260 + $0x48] sm:$0xff] %v671
        %710 = vst [vmem:[%s260 + $0x50] sm:$0xff] %v575
        %711 = vst [vmem:[%s260 + $0x58] sm:$0xff] %v673
        %712 = vst [vmem:[%s260 + $0x60] sm:$0xff] %v578
        %713 = vst [vmem:[%s260 + $0x68] sm:$0xff] %v676
        %714 = vst [vmem:[%s260 + $0x70] sm:$0xff] %v580
        %715 = vst [vmem:[%s260 + $0x78] sm:$0xff] %v678
        %716 = vst [vmem:[%s260 + $0x80] sm:$0xff] %v583
        %717 = vst [vmem:[%s260 + $0x88] sm:$0xff] %v681
        %718 = vst [vmem:[%s260 + $0x90] sm:$0xff] %v585
        %719 = vst [vmem:[%s260 + $0x98] sm:$0xff] %v683
        %720 = vst [vmem:[%s260 + $0xa0] sm:$0xff] %v588
        %721 = vst [vmem:[%s260 + $0xa8] sm:$0xff] %v686
        %722 = vst [vmem:[%s260 + $0xb0] sm:$0xff] %v590
        %723 = vst [vmem:[%s260 + $0xb8] sm:$0xff] %v688
        %724 = vst [vmem:[%s260 + $0xc0] sm:$0xff] %v593
        %725 = vst [vmem:[%s260 + $0xc8] sm:$0xff] %v691
        %726 = vst [vmem:[%s260 + $0xd0] sm:$0xff] %v595
        %727 = vst [vmem:[%s260 + $0xd8] sm:$0xff] %v693
        %728 = vst [vmem:[%s260 + $0xe0] sm:$0xff] %v598
        %729 = vst [vmem:[%s260 + $0xe8] sm:$0xff] %v696
        %730 = vst [vmem:[%s260 + $0xf0] sm:$0xff] %v600
        %731 = vst [vmem:[%s260 + $0xf8] sm:$0xff] %v698
        %v732 = vld [vmem:[#allocation7] sm:$0x3]
        %v733 = vmul.f32 %v732, -1.0
        %v735 = vperm.slane %v733, 0
        %v736 = vperm.slane %v733, 1
        %v739 = vadd.f32 %v563, %v735
        %v740 = vadd.f32 %v661, %v736
        %v741 = vadd.f32 %v565, %v735
        %v742 = vadd.f32 %v663, %v736
        %v743 = vadd.f32 %v568, %v735
        %v744 = vadd.f32 %v666, %v736
        %v745 = vadd.f32 %v570, %v735
        %v746 = vadd.f32 %v668, %v736
        %v747 = vadd.f32 %v573, %v735
        %v748 = vadd.f32 %v671, %v736
        %v749 = vadd.f32 %v575, %v735
        %v750 = vadd.f32 %v673, %v736
        %v751 = vadd.f32 %v578, %v735
        %v752 = vadd.f32 %v676, %v736
        %v753 = vadd.f32 %v580, %v735
        %v754 = vadd.f32 %v678, %v736
        %v755 = vadd.f32 %v583, %v735
        %v756 = vadd.f32 %v681, %v736
        %v757 = vadd.f32 %v585, %v735
        %v758 = vadd.f32 %v683, %v736
        %v759 = vadd.f32 %v588, %v735
        %v760 = vadd.f32 %v686, %v736
        %v761 = vadd.f32 %v590, %v735
        %v762 = vadd.f32 %v688, %v736
        %v763 = vadd.f32 %v593, %v735
        %v764 = vadd.f32 %v691, %v736
        %v765 = vadd.f32 %v595, %v735
        %v766 = vadd.f32 %v693, %v736
        %v767 = vadd.f32 %v598, %v735
        %v768 = vadd.f32 %v696, %v736
        %v769 = vadd.f32 %v600, %v735
        %v770 = vadd.f32 %v698, %v736
        %771 = vst [vmem:[%s253] sm:$0xff] %v739
        %772 = vst [vmem:[%s253 + $0x8] sm:$0xff] %v740
        %773 = vst [vmem:[%s253 + $0x10] sm:$0xff] %v741
        %774 = vst [vmem:[%s253 + $0x18] sm:$0xff] %v742
        %775 = vst [vmem:[%s253 + $0x20] sm:$0xff] %v743
        %776 = vst [vmem:[%s253 + $0x28] sm:$0xff] %v744
        %777 = vst [vmem:[%s253 + $0x30] sm:$0xff] %v745
        %778 = vst [vmem:[%s253 + $0x38] sm:$0xff] %v746
        %779 = vst [vmem:[%s253 + $0x40] sm:$0xff] %v747
        %780 = vst [vmem:[%s253 + $0x48] sm:$0xff] %v748
        %781 = vst [vmem:[%s253 + $0x50] sm:$0xff] %v749
        %782 = vst [vmem:[%s253 + $0x58] sm:$0xff] %v750
        %783 = vst [vmem:[%s253 + $0x60] sm:$0xff] %v751
        %784 = vst [vmem:[%s253 + $0x68] sm:$0xff] %v752
        %785 = vst [vmem:[%s253 + $0x70] sm:$0xff] %v753
        %786 = vst [vmem:[%s253 + $0x78] sm:$0xff] %v754
        %787 = vst [vmem:[%s253 + $0x80] sm:$0xff] %v755
        %788 = vst [vmem:[%s253 + $0x88] sm:$0xff] %v756
        %789 = vst [vmem:[%s253 + $0x90] sm:$0xff] %v757
        %790 = vst [vmem:[%s253 + $0x98] sm:$0xff] %v758
        %791 = vst [vmem:[%s253 + $0xa0] sm:$0xff] %v759
        %792 = vst [vmem:[%s253 + $0xa8] sm:$0xff] %v760
        %793 = vst [vmem:[%s253 + $0xb0] sm:$0xff] %v761
        %794 = vst [vmem:[%s253 + $0xb8] sm:$0xff] %v762
        %795 = vst [vmem:[%s253 + $0xc0] sm:$0xff] %v763
        %796 = vst [vmem:[%s253 + $0xc8] sm:$0xff] %v764
        %797 = vst [vmem:[%s253 + $0xd0] sm:$0xff] %v765
        %798 = vst [vmem:[%s253 + $0xd8] sm:$0xff] %v766
        %799 = vst [vmem:[%s253 + $0xe0] sm:$0xff] %v767
        %800 = vst [vmem:[%s253 + $0xe8] sm:$0xff] %v768
        %801 = vst [vmem:[%s253 + $0xf0] sm:$0xff] %v769
        %802 = vst [vmem:[%s253 + $0xf8] sm:$0xff] %v770
        %s803 = sand.u32 %s102, 1
        %s804 = scalar_lea.sflag [#allocation4], %s803
        %s805 = sand.u32 %s102, 1
        %s806 = smul.addr %s805, 256
        %s807 = scalar_lea.vmem [#allocation8], %s806
        %s808 = sand.u32 %s128, 1
        %s809 = scalar_lea.sflag [#allocation10], %s808
        %s810 = sand.u32 %s128, 1
        %s811 = smul.addr %s810, 256
        %s812 = scalar_lea.vmem [#allocation9], %s811
        // Predicated region
        $region45: #{tpu_custom_call.1} parent=31 // pred_check
          %p813 = pneg %p112
        $region46: #{tpu_custom_call.1} parent=31 // pred_check_branch
          %815 = sbr.rel (%p813) target = $region48
        $region47: #{tpu_custom_call.1} parent=31 // pred_region
          %s816 = smul.u32 16, %s26
          %818 = vsyncadd %s804, 0
          %s819 = smul.addr %s816, 2
          %s820 = smul.addr %s819, 8
          %s821 = scalar_lea.hbm %s3, %s820
          %s822 = sshll.u32 %s807, 4
          %s823 = int_to_ptr.vmem [resolvable:$true] %s822
          %s824 = sshll.u32 %s821, 4
          %s825 = int_to_ptr.hbm [resolvable:$true] %s824
          %830 = dma.vmem_to_hbm [thread:$0]  %s823, 4096, %s825, %s804, 256, 256, 16
        $region48: #{tpu_custom_call.1} parent=31 // pred_fallthru
          _
        // Predicated region
        $region49: #{tpu_custom_call.1} parent=31 // pred_check
          %p831 = pneg %p138
        $region50: #{tpu_custom_call.1} parent=31 // pred_check_branch
          %833 = sbr.rel (%p831) target = $region52
        $region51: #{tpu_custom_call.1} parent=31 // pred_region
          %s834 = smul.u32 16, %s26
          %836 = vsyncadd %s809, 0
          %s837 = smul.addr %s834, 2
          %s838 = smul.addr %s837, 8
          %s839 = scalar_lea.hbm %s4, %s838
          %s840 = sshll.u32 %s812, 4
          %s841 = int_to_ptr.vmem [resolvable:$true] %s840
          %s842 = sshll.u32 %s839, 4
          %s843 = int_to_ptr.hbm [resolvable:$true] %s842
          %848 = dma.vmem_to_hbm [thread:$0]  %s841, 4096, %s843, %s809, 256, 256, 16
        $region52: #{tpu_custom_call.1} parent=31 // pred_fallthru
          _
      $region32: #{tpu_custom_call.1} parent=5 // pred_fallthru
        _
      %p849 = scmp.le.s32.totalorder 2, %s21
      // Predicated region
      $region53: #{tpu_custom_call.1} parent=5 // pred_check
        %p850 = pneg %p849
      $region54: #{tpu_custom_call.1} parent=5 // pred_check_branch
        %852 = sbr.rel (%p850) target = $region56
      $region55: #{tpu_custom_call.1} parent=5 // pred_region
        %s853 = ssub.s32 %s21, 2
        // Predicated region
        $region57: #{tpu_custom_call.1} parent=55 // pred_check
          %p854 = pneg %p118
        $region58: #{tpu_custom_call.1} parent=55 // pred_check_branch
          %856 = sbr.rel (%p854) target = $region60
        $region59: #{tpu_custom_call.1} parent=55 // pred_region
          %s857 = sand.u32 %s103, 1
          %s858 = scalar_lea.sflag [#allocation4], %s857
          %s859 = sand.u32 %s103, 1
          %s860 = smul.addr %s859, 256
          %s861 = scalar_lea.vmem [#allocation8], %s860
          %863 = dma.done %s858, 4096
        $region60: #{tpu_custom_call.1} parent=55 // pred_fallthru
          _
        // Predicated region
        $region61: #{tpu_custom_call.1} parent=55 // pred_check
          %p864 = pneg %p144
        $region62: #{tpu_custom_call.1} parent=55 // pred_check_branch
          %866 = sbr.rel (%p864) target = $region64
        $region63: #{tpu_custom_call.1} parent=55 // pred_region
          %s867 = sand.u32 %s129, 1
          %s868 = scalar_lea.sflag [#allocation10], %s867
          %s869 = sand.u32 %s129, 1
          %s870 = smul.addr %s869, 256
          %s871 = scalar_lea.vmem [#allocation9], %s870
          %873 = dma.done %s868, 4096
        $region64: #{tpu_custom_call.1} parent=55 // pred_fallthru
          _
      $region56: #{tpu_custom_call.1} parent=5 // pred_fallthru
        _
    $region6: #{tpu_custom_call.1} parent=1 // loop_footer
      %s25 = sadd.s32 1, %s21
    $region7: #{tpu_custom_call.1} parent=1 // loop_footer_branch
      %20 = sbr.rel target = $region3
    $region8: #{tpu_custom_call.1} parent=1 // loop_exit
      _
    %874 = vsyncpa [#allocation3], 1
    %s875 = scalar_lea.sflag [#allocation3], 1
    %876 = vsyncpa %s875, 1
    %877 = vsyncpa [#allocation6], 1
    %878 = vsyncpa [#allocation4], 1
    %s879 = scalar_lea.sflag [#allocation4], 1
    %880 = vsyncpa %s879, 1
    %881 = vsyncpa [#allocation10], 1
    %s882 = scalar_lea.sflag [#allocation10], 1
    %883 = vsyncpa %s882, 1

</llo_original>
